<compile_context>
chip_gen: v6e
topology: v6e:2x2x1
jax: 0.10.0
libtpu: 0.0.40
codegen_flags: <defaults>
</compile_context>

<pallas_src>
import math

import jax
import jax.numpy as jnp
from jax.experimental import pallas as pl
from jax.experimental.pallas import tpu as pltpu

D_MODEL = 128
MAX_SEQ_LENGTH = 512

# Double-buffered x + out blocks must fit inside this much VMEM.
_VMEM_SLAB_BUDGET = 32 * 1024 * 1024


def make_positional_encoding(max_seq_length=MAX_SEQ_LENGTH, d_model=D_MODEL,
                             dtype=jnp.float32):
    """Same table as the PyTorch __init__ (register_buffer 'pe'), shape (L, D)."""
    position = jnp.arange(max_seq_length, dtype=jnp.float32)[:, None]        # (L, 1)
    div_term = jnp.exp(
        jnp.arange(0, d_model, 2, dtype=jnp.float32) * (-math.log(10000.0) / d_model)
    )                                                                         # (D/2,)
    angles = position * div_term                                              # (L, D/2)
    pe = jnp.zeros((max_seq_length, d_model), jnp.float32)
    pe = pe.at[:, 0::2].set(jnp.sin(angles))
    pe = pe.at[:, 1::2].set(jnp.cos(angles))
    return pe.astype(dtype)


def pos_enc_kernel(x_ref, pe_ref, out_ref):
    # x_ref: (bt, S, D)   pe_ref: (S, D)  -> broadcast add over the batch axis.
    out_ref[...] = (x_ref[...] + pe_ref[...]).astype(out_ref.dtype)
    # TODO(synk): nn.Dropout(p=0.1) omitted -- identity in eval/inference mode.


def _device_kind():
    try:
        return jax.devices()[0].device_kind.lower()
    except Exception:
        return ""


def _default_target_rows():
    """Rows (of 128 lanes) per grid step, sized per TPU generation."""
    kind = _device_kind()
    if "v5" in kind and ("lite" in kind or "5e" in kind):
        return 2048   # ~1 MiB f32 slab: at ~0.8 TB/s the 0.35 us step cost is <15%
    if "v6" in kind or "v7" in kind:
        return 8192   # ~4 MiB f32 slab: ~86%+ of HBM roofline, fits default scoped VMEM
    return 4096       # unknown chip: middle-of-the-road slab


def _tensorcores_per_chip():
    return 2 if "v7" in _device_kind() else 1


def positional_encoding(x, pe, *, target_rows=None):
    """x: (B, S, D); pe: (max_seq_length, D) sinusoid table.  Returns x + pe[:S]."""
    B, S, D = x.shape
    L, Dp = pe.shape
    assert Dp == D and S <= L

    # Cast pe to the activation dtype (bf16 stays bf16 end-to-end; halves pe DMA).
    # NOTE: PyTorch's bf16 x + f32 pe would promote the output to f32; we keep
    # the output in x.dtype intentionally.
    pe_slice = pe[:S].astype(x.dtype)

    itemsize = jnp.dtype(x.dtype).itemsize
    if target_rows is None:
        target_rows = _default_target_rows()

    # Largest batch tile whose double-buffered x + out blocks fit the VMEM budget.
    rows_vmem_cap = max(S, _VMEM_SLAB_BUDGET // (4 * D * itemsize))
    rows_per_step = max(S, min(target_rows, rows_vmem_cap))

    bt = max(1, min(B, rows_per_step // S))
    grid_len = pl.cdiv(B, bt)

    # 2-TensorCore chips (v7x): grid=2..7 would leave each core with too few
    # steps to pipeline.  Either collapse to one big slab (if it fits) or
    # guarantee >= 8 steps (>= 4 per core).
    if _tensorcores_per_chip() >= 2 and 1 < grid_len < 8:
        if B * S <= rows_vmem_cap:
            bt, grid_len = B, 1
        else:
            bt = max(1, -(-B // 8))
            grid_len = pl.cdiv(B, bt)

    # Raise the scoped-VMEM limit only if the double-buffered blocks might not
    # fit the smallest default (16 MiB on v5e); always stays well under the
    # 64 MiB physical VMEM of v7x.
    block_bytes = bt * S * D * itemsize
    pe_bytes = S * D * itemsize
    vmem_need = 4 * block_bytes + 2 * pe_bytes + (2 << 20)   # + 2 MiB headroom
    compiler_kwargs = dict(dimension_semantics=("parallel",))
    if vmem_need > (16 << 20):
        compiler_kwargs["vmem_limit_bytes"] = int(min(vmem_need, 48 << 20))

    # input_output_aliases={0: 0} would reuse x's HBM buffer for the output
    # (the add is in-place compatible) but donates x; left off so callers can
    # keep using x after the call.
    return pl.pallas_call(
        pos_enc_kernel,
        out_shape=jax.ShapeDtypeStruct((B, S, D), x.dtype),
        grid_spec=pltpu.PrefetchScalarGridSpec(
            num_scalar_prefetch=0,
            grid=(grid_len,),
            in_specs=[
                pl.BlockSpec((bt, S, D), lambda b: (b, 0, 0)),   # x slab
                pl.BlockSpec((S, D), lambda b: (0, 0)),          # pe (resident)
            ],
            out_specs=pl.BlockSpec((bt, S, D), lambda b: (b, 0, 0)),
        ),
        compiler_params=pltpu.CompilerParams(**compiler_kwargs),
    )(x, pe_slice)


def _reference(x, pe):
    # Pure-JAX reference of the PyTorch forward (eval mode).
    S = x.shape[1]
    return x + pe[None, :S, :]


if __name__ == "__main__":
    key = jax.random.PRNGKey(0)

    B, S = 2, 8
    x = jax.random.normal(key, (B, S, D_MODEL), jnp.float32)
    pe = make_positional_encoding(MAX_SEQ_LENGTH, D_MODEL)

    out = positional_encoding(x, pe)
    out = jax.block_until_ready(out)

    ref = _reference(x, pe)
    assert out.shape == (B, S, D_MODEL)
    assert jnp.allclose(out, ref, atol=1e-5, rtol=1e-5), "mismatch vs reference"

    print("KERNEL_OK")
</pallas_src>

<mosaic_0001>
module attributes {stable_mosaic.version = 11 : i64} {
  func.func @pos_enc_kernel(%arg0: i32, %arg1: memref<2x8x128xf32, #tpu.memory_space<vmem>>, %arg2: memref<8x128xf32, #tpu.memory_space<vmem>>, %arg3: memref<2x8x128xf32, #tpu.memory_space<vmem>>) attributes {dimension_semantics = [#tpu.dimension_semantics<parallel>], iteration_bounds = array<i64: 1>, scalar_prefetch = 0 : i64, scratch_operands = 0 : i64, tpu.core_type = #tpu.core_type<tc>, window_params = [{transform_indices = @transform_0, window_bounds = array<i64: 2, 8, 128>}, {pipeline_mode = #tpu.pipeline_mode<synchronous>, transform_indices = @transform_1, window_bounds = array<i64: 8, 128>}, {transform_indices = @transform_2, window_bounds = array<i64: 2, 8, 128>}]} {
    %c0 = arith.constant 0 : index
    %c0_0 = arith.constant 0 : index
    %c0_1 = arith.constant 0 : index
    %0 = vector.load %arg1[%c0, %c0_0, %c0_1] : memref<2x8x128xf32, #tpu.memory_space<vmem>>, vector<2x8x128xf32>
    %c0_2 = arith.constant 0 : index
    %c0_3 = arith.constant 0 : index
    %1 = vector.load %arg2[%c0_2, %c0_3] : memref<8x128xf32, #tpu.memory_space<vmem>>, vector<8x128xf32>
    %2 = vector.shape_cast %1 : vector<8x128xf32> to vector<1x8x128xf32>
    %3 = vector.broadcast %2 : vector<1x8x128xf32> to vector<2x8x128xf32>
    %4 = arith.addf %0, %3 : vector<2x8x128xf32>
    %c0_4 = arith.constant 0 : index
    %c0_5 = arith.constant 0 : index
    %c0_6 = arith.constant 0 : index
    %5 = vector.load %arg3[%c0_4, %c0_5, %c0_6] : memref<2x8x128xf32, #tpu.memory_space<vmem>>, vector<2x8x128xf32>
    tpu.vector_store %arg3[%c0_4, %c0_5, %c0_6], %4 {strides = array<i32>} : memref<2x8x128xf32, #tpu.memory_space<vmem>>, vector<2x8x128xf32>,
    return
  }
  func.func @transform_0(%arg0: i32) -> (i32, i32, i32) {
    %c0_i32 = arith.constant 0 : i32
    %c0_i32_0 = arith.constant 0 : i32
    %c0_i32_1 = arith.constant 0 : i32
    return %arg0, %c0_i32, %c0_i32_0 : i32, i32, i32
  }
  func.func @transform_1(%arg0: i32) -> (i32, i32) {
    %c0_i32 = arith.constant 0 : i32
    %c0_i32_0 = arith.constant 0 : i32
    %c0_i32_1 = arith.constant 0 : i32
    return %c0_i32, %c0_i32_0 : i32, i32
  }
  func.func @transform_2(%arg0: i32) -> (i32, i32, i32) {
    %c0_i32 = arith.constant 0 : i32
    %c0_i32_0 = arith.constant 0 : i32
    %c0_i32_1 = arith.constant 0 : i32
    return %arg0, %c0_i32, %c0_i32_0 : i32, i32, i32
  }
}

</mosaic_0001>

<llo_original>
// kernel: tpu_custom_call.1
$region0: #{tpu_custom_call.1}
  #allocation0 [shape = 'u32[]', space=smem, size = 0x4, offset = 0x4, fixed_abs, tag = 'smem constant byte address 0x4 - core index']
  #allocation1 [shape = 'u32[144,128]{1,0:T(1,128)}', space=vmem, size = 0x12000, scoped, tag = 'internal scratch']
  %s0 = inlined_call_operand.hbm [shape: f32[2,8,128], index: 0, kind: input, shape index: {}]
  %s1 = inlined_call_operand.hbm [shape: f32[8,128], index: 1, kind: input, shape index: {}]
  %s2 = inlined_call_operand.hbm [shape: f32[2,8,128], index: 2, kind: output, shape index: {}]
  %s3 = sld [smem:[#allocation0]]
  $region26: #{tpu_custom_call.1} parent=0
    _
  %s5 = ssub.s32 1, %s3
  %s6 = scalar_select 0, %s5, %s3
  $region1: #{tpu_custom_call.1} parent=0
    #allocation2 [shape = 'u8[8192]{0}', space=vmem, size = 0x2000, scoped, tag = 'input window, operand 0, single buffered']
    #allocation3 [shape = 's32[1]{0}', space=sflag, size = 0x4, scoped, tag = 'scoped memory for tpu_custom_call.1']
    #allocation4 [shape = 's32[1]{0}', space=sflag, size = 0x4, scoped, tag = 'scoped memory for tpu_custom_call.1']
    #allocation5 [shape = 'u8[4096]{0}', space=vmem, size = 0x1000, scoped, tag = 'input window, operand 1, single buffered']
    #allocation6 [shape = 's32[1]{0}', space=sflag, size = 0x4, scoped, tag = 'scoped memory for tpu_custom_call.1']
    #allocation7 [shape = 'u8[8192]{0}', space=vmem, size = 0x2000, scoped, tag = 'output window, operand 0, single buffered']
    %7 = vsyncpa [#allocation3], 0
    %8 = vsyncpa [#allocation6], 0
    %9 = vsyncpa [#allocation4], 0
    // Predicated region
    $region2: #{tpu_custom_call.1} parent=1 // pred_check
      _
    $region3: #{tpu_custom_call.1} parent=1 // pred_check_branch
      %11 = sbr.rel (0) target = $region5
    $region4: #{tpu_custom_call.1} parent=1 // pred_region
      %s13 = ssub.s32 256, 256
      %14 = vsyncadd [#allocation3], %s13
      %s15 = sshll.u32 [#allocation2], 4
      %s16 = int_to_ptr.vmem [resolvable:$true] %s15
      %21 = dma.hbm_to_vmem [thread:$0]  %s0, 256, %s16, [#allocation3], 128, 128, 8
    $region5: #{tpu_custom_call.1} parent=1 // pred_fallthru
      _
    // Predicated region
    $region6: #{tpu_custom_call.1} parent=1 // pred_check
      _
    $region7: #{tpu_custom_call.1} parent=1 // pred_check_branch
      %23 = sbr.rel (0) target = $region9
    $region8: #{tpu_custom_call.1} parent=1 // pred_region
      %s25 = ssub.s32 128, 128
      %26 = vsyncadd [#allocation6], %s25
      %s28 = sshll.u32 [#allocation5], 4
      %s29 = int_to_ptr.vmem [resolvable:$true] %s28
      %31 = dma.hbm_to_vmem [thread:$0]  %s1, 128, %s29, [#allocation6]
    $region9: #{tpu_custom_call.1} parent=1 // pred_fallthru
      _
    // Predicated region
    $region10: #{tpu_custom_call.1} parent=1 // pred_check
      _
    $region11: #{tpu_custom_call.1} parent=1 // pred_check_branch
      %33 = sbr.rel (0) target = $region13
    $region12: #{tpu_custom_call.1} parent=1 // pred_region
      %34 = dma.done [#allocation3], 256
    $region13: #{tpu_custom_call.1} parent=1 // pred_fallthru
      _
    // Predicated region
    $region14: #{tpu_custom_call.1} parent=1 // pred_check
      _
    $region15: #{tpu_custom_call.1} parent=1 // pred_check_branch
      %36 = sbr.rel (0) target = $region17
    $region16: #{tpu_custom_call.1} parent=1 // pred_region
      %37 = dma.done [#allocation6], 128
    $region17: #{tpu_custom_call.1} parent=1 // pred_fallthru
      _
    %v38 = vld [vmem:[#allocation2] sm:$0xff]
    %v39 = vld [vmem:[#allocation2 + $0x8] sm:$0xff]
    %v40 = vld [vmem:[#allocation5] sm:$0xff]
    %v41 = vadd.f32 %v38, %v40
    %v42 = vadd.f32 %v39, %v40
    %43 = vst [vmem:[#allocation7] sm:$0xff] %v41
    %44 = vst [vmem:[#allocation7 + $0x8] sm:$0xff] %v42
    // Predicated region
    $region18: #{tpu_custom_call.1} parent=1 // pred_check
      _
    $region19: #{tpu_custom_call.1} parent=1 // pred_check_branch
      %46 = sbr.rel (0) target = $region21
    $region20: #{tpu_custom_call.1} parent=1 // pred_region
      %s48 = ssub.s32 256, 256
      %49 = vsyncadd [#allocation4], %s48
      %s50 = sshll.u32 [#allocation7], 4
      %s51 = int_to_ptr.vmem [resolvable:$true] %s50
      %56 = dma.vmem_to_hbm [thread:$0]  %s51, 256, %s2, [#allocation4], 128, 128, 8
    $region21: #{tpu_custom_call.1} parent=1 // pred_fallthru
      _
    // Predicated region
    $region22: #{tpu_custom_call.1} parent=1 // pred_check
      _
    $region23: #{tpu_custom_call.1} parent=1 // pred_check_branch
      %58 = sbr.rel (0) target = $region25
    $region24: #{tpu_custom_call.1} parent=1 // pred_region
      %59 = dma.done [#allocation4], 256
    $region25: #{tpu_custom_call.1} parent=1 // pred_fallthru
      _
    %60 = vsyncpa [#allocation3], 1
    %61 = vsyncpa [#allocation6], 1
    %62 = vsyncpa [#allocation4], 1

</llo_original>
